<compile_context>
chip_gen: v6e
topology: v6e:2x2x1
jax: 0.10.0
libtpu: 0.0.40
codegen_flags: <defaults>
</compile_context>

<pallas_src>
import functools

import jax
import jax.numpy as jnp
from jax import lax
from jax.experimental import pallas as pl
from jax.experimental.pallas import tpu as pltpu


def _conv_stats_kernel(p_ref, w_ref, conv_ref, stats_ref, *, cout):
    """Phase 1: fused im2col conv matmul + per-tile BN partial statistics.

    p_ref:     (K, TM)      bf16  im2col patches: taps*Cin on sublanes, spatial on lanes
    w_ref:     (Cout, K)    bf16  conv weight, one row per output channel
    conv_ref:  (Cout, TM)   f32   conv result for this lane tile (lane-dense store)
    stats_ref: (SROWS, 128) f32   col 0 = per-channel sum, col 1 = per-channel sum-of-squares
    """
    # Single MXU matmul, f32 accumulation.
    y = jnp.dot(w_ref[...], p_ref[...], preferred_element_type=jnp.float32)  # (Cout, TM)
    conv_ref[...] = y

    # Per-tile partial statistics for the two-phase BatchNorm reduction.
    stats_ref[...] = jnp.zeros_like(stats_ref)
    stats_ref[0:cout, 0:1] = jnp.sum(y, axis=1, keepdims=True)
    stats_ref[0:cout, 1:2] = jnp.sum(y * y, axis=1, keepdims=True)


def _bn_relu_kernel(y_ref, scale_ref, shift_ref, o_ref):
    """Phase 2: folded BatchNorm affine (y*scale + shift) + ReLU, all f32, lane-dense."""
    o_ref[...] = jnp.maximum(y_ref[...] * scale_ref[...] + shift_ref[...], 0.0)


def aspp_forward(x_nchw, weight_oihw, gamma, beta, *, rate, eps=1e-5):
    """Matches ASPP_module.forward. x_nchw: (N, Cin, H, W) -> (N, Cout, H, W), f32."""
    N, Cin, H, W = x_nchw.shape
    Cout, Cin_w, KH, KW = weight_oihw.shape
    assert Cin_w == Cin
    pad = 0 if KH == 1 else rate  # rate==1 -> 1x1 conv, pad 0; else 3x3 dilated, pad=rate
    NP = N * H * W
    K = KH * KW * Cin

    # ---- glue (plain JAX): fold padding + dilated taps into one im2col patch matrix,
    #      transposed so channels sit on sublanes and spatial positions on lanes. ----
    # TODO(synk): at production ASPP sizes the 9x patch inflation should instead be
    # gathered per-tap via BlockSpec index_maps to avoid the extra HBM traffic.
    x_pad = jnp.pad(x_nchw, ((0, 0), (0, 0), (pad, pad), (pad, pad)))
    taps = [x_pad[:, :, kh * rate:kh * rate + H, kw * rate:kw * rate + W]
            for kh in range(KH) for kw in range(KW)]            # each (N, Cin, H, W)
    patches = jnp.stack(taps, axis=0)                           # (KH*KW, N, Cin, H, W)
    patches = jnp.transpose(patches, (0, 2, 1, 3, 4))           # (KH*KW, Cin, N, H, W)
    patches_t = patches.reshape(K, NP).astype(jnp.bfloat16)     # (K, N*H*W)  bf16 operand
    w_t = jnp.transpose(weight_oihw, (0, 2, 3, 1)).reshape(Cout, K).astype(jnp.bfloat16)

    # Spatial (lane) tiling: 1-D "parallel" grid over lane tiles of the flattened
    # spatial axis. 256 lanes/tile here; sweep larger tiles at production sizes.
    TM = 256 if NP % 256 == 0 else NP
    num_tiles = NP // TM
    SROWS = ((Cout + 7) // 8) * 8  # (8,128)-aligned stats block rows

    conv_t, stats = pl.pallas_call(
        functools.partial(_conv_stats_kernel, cout=Cout),
        grid=(num_tiles,),
        in_specs=[
            pl.BlockSpec((K, TM), lambda i: (0, i)),       # patches tile
            pl.BlockSpec((Cout, K), lambda i: (0, 0)),     # weight, resident
        ],
        out_specs=[
            pl.BlockSpec((Cout, TM), lambda i: (0, i)),    # conv result tile (lane-dense)
            pl.BlockSpec((SROWS, 128), lambda i: (i, 0)),  # per-tile partial stats
        ],
        out_shape=[
            jax.ShapeDtypeStruct((Cout, NP), jnp.float32),
            jax.ShapeDtypeStruct((num_tiles * SROWS, 128), jnp.float32),
        ],
        compiler_params=pltpu.CompilerParams(dimension_semantics=("parallel",)),
    )(patches_t, w_t)

    # ---- combine partial stats over the FULL (N,H,W) extent and fold the BN affine
    #      into one per-channel scale/shift (tiny (Cout,)-sized math). ----
    tot = stats.reshape(num_tiles, SROWS, 128).sum(axis=0)
    sum_c = tot[:Cout, 0]
    sumsq_c = tot[:Cout, 1]
    cnt = jnp.float32(NP)
    mean = sum_c / cnt
    var = sumsq_c / cnt - mean * mean            # biased variance (train-mode BatchNorm2d)
    scale = gamma.astype(jnp.float32) * lax.rsqrt(var + eps)
    shift = beta.astype(jnp.float32) - mean * scale

    out_t = pl.pallas_call(
        _bn_relu_kernel,
        grid=(num_tiles,),
        in_specs=[
            pl.BlockSpec((Cout, TM), lambda i: (0, i)),    # conv tile
            pl.BlockSpec((Cout, 1), lambda i: (0, 0)),     # folded scale (resident)
            pl.BlockSpec((Cout, 1), lambda i: (0, 0)),     # folded shift (resident)
        ],
        out_specs=pl.BlockSpec((Cout, TM), lambda i: (0, i)),
        out_shape=jax.ShapeDtypeStruct((Cout, NP), jnp.float32),
        compiler_params=pltpu.CompilerParams(dimension_semantics=("parallel",)),
    )(conv_t, scale.reshape(Cout, 1), shift.reshape(Cout, 1))

    # Undo the kernel layout: (Cout, N*H*W) -> (N, Cout, H, W).
    return jnp.transpose(out_t.reshape(Cout, N, H, W), (1, 0, 2, 3))


if __name__ == "__main__":
    # Module config (synthetic, deterministic): ASPP_module(inplanes=4, planes=8, rate=2)
    inplanes, planes, rate = 4, 8, 2
    N, H, W = 2, 16, 16
    KH = KW = (1 if rate == 1 else 3)

    key = jax.random.PRNGKey(0)
    kx, kw = jax.random.split(key)

    x = jax.random.normal(kx, (N, inplanes, H, W), dtype=jnp.float32)

    # Conv weight: kaiming_normal_ (fan_in, gain sqrt(2)) -> std = sqrt(2 / fan_in)
    fan_in = inplanes * KH * KW
    weight = jax.random.normal(kw, (planes, inplanes, KH, KW), dtype=jnp.float32)
    weight = weight * jnp.sqrt(2.0 / fan_in)

    # BatchNorm2d params: weight.fill_(1), bias.zero_()
    gamma = jnp.ones((planes,), jnp.float32)
    beta = jnp.zeros((planes,), jnp.float32)

    out = aspp_forward(x, weight, gamma, beta, rate=rate)
    jax.block_until_ready(out)
    assert out.shape == (N, planes, H, W)
    assert bool(jnp.all(out >= 0.0))  # ReLU sanity
    print("KERNEL_OK")
</pallas_src>

<mosaic_0001>
module attributes {stable_mosaic.version = 11 : i64} {
  func.func @_conv_stats_kernel(%arg0: i32, %arg1: memref<36x256xbf16, #tpu.memory_space<vmem>>, %arg2: memref<8x36xbf16, #tpu.memory_space<vmem>>, %arg3: memref<8x256xf32, #tpu.memory_space<vmem>>, %arg4: memref<8x128xf32, #tpu.memory_space<vmem>>) attributes {dimension_semantics = [#tpu.dimension_semantics<parallel>], iteration_bounds = array<i64: 2>, scalar_prefetch = 0 : i64, scratch_operands = 0 : i64, tpu.core_type = #tpu.core_type<tc>, window_params = [{transform_indices = @transform_0, window_bounds = array<i64: 36, 256>}, {pipeline_mode = #tpu.pipeline_mode<synchronous>, transform_indices = @transform_1, window_bounds = array<i64: 8, 36>}, {transform_indices = @transform_2, window_bounds = array<i64: 8, 256>}, {transform_indices = @transform_3, window_bounds = array<i64: 8, 128>}]} {
    %c0 = arith.constant 0 : index
    %c0_0 = arith.constant 0 : index
    %0 = vector.load %arg2[%c0, %c0_0] : memref<8x36xbf16, #tpu.memory_space<vmem>>, vector<8x36xbf16>
    %c0_1 = arith.constant 0 : index
    %c0_2 = arith.constant 0 : index
    %1 = vector.load %arg1[%c0_1, %c0_2] : memref<36x256xbf16, #tpu.memory_space<vmem>>, vector<36x256xbf16>
    %cst = arith.constant dense<0.000000e+00> : vector<8x256xf32>
    %2 = tpu.matmul %0, %1, %cst {dimension_numbers = #tpu.dot_dimension_numbers<[1], [0], [0], [1], [0, 0, 1, 1], [], []>} : vector<8x36xbf16>, vector<36x256xbf16>, vector<8x256xf32> -> vector<8x256xf32>
    %c0_3 = arith.constant 0 : index
    %c0_4 = arith.constant 0 : index
    %3 = vector.load %arg3[%c0_3, %c0_4] : memref<8x256xf32, #tpu.memory_space<vmem>>, vector<8x256xf32>
    tpu.vector_store %arg3[%c0_3, %c0_4], %2 {strides = array<i32>} : memref<8x256xf32, #tpu.memory_space<vmem>>, vector<8x256xf32>,
    %cst_5 = arith.constant 0.000000e+00 : f32
    %4 = vector.broadcast %cst_5 : f32 to vector<8x128xf32>
    %c0_6 = arith.constant 0 : index
    %c0_7 = arith.constant 0 : index
    %5 = vector.load %arg4[%c0_6, %c0_7] : memref<8x128xf32, #tpu.memory_space<vmem>>, vector<8x128xf32>
    tpu.vector_store %arg4[%c0_6, %c0_7], %4 {strides = array<i32>} : memref<8x128xf32, #tpu.memory_space<vmem>>, vector<8x128xf32>,
    %cst_8 = arith.constant dense<0.000000e+00> : vector<8xf32>
    %6 = vector.multi_reduction <add>, %2, %cst_8 [1] : vector<8x256xf32> to vector<8xf32>
    %7 = vector.shape_cast %6 : vector<8xf32> to vector<8x1xf32>
    %c0_9 = arith.constant 0 : index
    %c0_10 = arith.constant 0 : index
    %8 = vector.load %arg4[%c0_9, %c0_10] : memref<8x128xf32, #tpu.memory_space<vmem>>, vector<8x1xf32>
    tpu.vector_store %arg4[%c0_9, %c0_10], %7 {strides = array<i32>} : memref<8x128xf32, #tpu.memory_space<vmem>>, vector<8x1xf32>,
    %9 = arith.mulf %2, %2 : vector<8x256xf32>
    %cst_11 = arith.constant dense<0.000000e+00> : vector<8xf32>
    %10 = vector.multi_reduction <add>, %9, %cst_11 [1] : vector<8x256xf32> to vector<8xf32>
    %11 = vector.shape_cast %10 : vector<8xf32> to vector<8x1xf32>
    %c0_12 = arith.constant 0 : index
    %c1 = arith.constant 1 : index
    %12 = vector.load %arg4[%c0_12, %c1] : memref<8x128xf32, #tpu.memory_space<vmem>>, vector<8x1xf32>
    tpu.vector_store %arg4[%c0_12, %c1], %11 {strides = array<i32>} : memref<8x128xf32, #tpu.memory_space<vmem>>, vector<8x1xf32>,
    return
  }
  func.func @transform_0(%arg0: i32) -> (i32, i32) {
    %c0_i32 = arith.constant 0 : i32
    %c0_i32_0 = arith.constant 0 : i32
    return %c0_i32, %arg0 : i32, i32
  }
  func.func @transform_1(%arg0: i32) -> (i32, i32) {
    %c0_i32 = arith.constant 0 : i32
    %c0_i32_0 = arith.constant 0 : i32
    %c0_i32_1 = arith.constant 0 : i32
    return %c0_i32, %c0_i32_0 : i32, i32
  }
  func.func @transform_2(%arg0: i32) -> (i32, i32) {
    %c0_i32 = arith.constant 0 : i32
    %c0_i32_0 = arith.constant 0 : i32
    return %c0_i32, %arg0 : i32, i32
  }
  func.func @transform_3(%arg0: i32) -> (i32, i32) {
    %c0_i32 = arith.constant 0 : i32
    %c0_i32_0 = arith.constant 0 : i32
    return %arg0, %c0_i32 : i32, i32
  }
}

</mosaic_0001>

<llo_original>
// kernel: tpu_custom_call.1
$region0: #{tpu_custom_call.1}
  #allocation0 [shape = 'u32[]', space=smem, size = 0x4, offset = 0x4, fixed_abs, tag = 'smem constant byte address 0x4 - core index']
  #allocation1 [shape = 'u32[144,128]{1,0:T(1,128)}', space=vmem, size = 0x12000, scoped, tag = 'internal scratch']
  %s0 = inlined_call_operand.hbm [shape: bf16[36,512], index: 0, kind: input, shape index: {}]
  %s1 = inlined_call_operand.hbm [shape: bf16[8,36], index: 1, kind: input, shape index: {}]
  %s2 = inlined_call_operand.hbm [shape: f32[8,512], index: 2, kind: output, shape index: {0}]
  %s3 = inlined_call_operand.hbm [shape: f32[16,128], index: 3, kind: output, shape index: {1}]
  %4 = xla_tuple %s2, %s3
  %s5 = sld [smem:[#allocation0]]
  $region57: #{tpu_custom_call.1} parent=0
    _
  %s7 = ssub.s32 1, %s5
  %s8 = scalar_select 0, %s7, %s5
  $region1: #{tpu_custom_call.1} parent=0
    #allocation2 [shape = 'u8[40960]{0}', space=vmem, size = 0xa000, scoped, tag = 'input window, operand 0']
    #allocation3 [shape = 's32[2]{0}', space=sflag, size = 0x8, scoped, tag = 'scoped memory for tpu_custom_call.1']
    #allocation4 [shape = 's32[2]{0}', space=sflag, size = 0x8, scoped, tag = 'scoped memory for tpu_custom_call.1']
    #allocation5 [shape = 'u8[2048]{0}', space=vmem, size = 0x800, scoped, tag = 'input window, operand 1, single buffered']
    #allocation6 [shape = 's32[1]{0}', space=sflag, size = 0x4, scoped, tag = 'scoped memory for tpu_custom_call.1']
    #allocation7 [shape = 'u8[16384]{0}', space=vmem, size = 0x4000, scoped, tag = 'output window, operand 0']
    #allocation8 [shape = 'u8[8192]{0}', space=vmem, size = 0x2000, scoped, tag = 'output window, operand 1']
    #allocation9 [shape = 's32[2]{0}', space=sflag, size = 0x8, scoped, tag = 'scoped memory for tpu_custom_call.1']
    %9 = vsyncpa [#allocation3], 0
    %s10 = scalar_lea.sflag [#allocation3], 1
    %11 = vsyncpa %s10, 0
    %12 = vsyncpa [#allocation6], 0
    %13 = vsyncpa [#allocation4], 0
    %s14 = scalar_lea.sflag [#allocation4], 1
    %15 = vsyncpa %s14, 0
    %16 = vsyncpa [#allocation9], 0
    %s17 = scalar_lea.sflag [#allocation9], 1
    %18 = vsyncpa %s17, 0
    loop: start=0, step=1, limit=4
    $region2: #{tpu_custom_call.1} parent=1 // loop_pre_header
      _
    $region3: #{tpu_custom_call.1} parent=1 // loop_header
      %s20 = sphi 0, %s24
      %p21 = scmp.ge.s32.totalorder %s20, 4
      %s30 = sphi 0, %s32
      %s33 = sphi 0, %s30
      %s34 = sphi 0, %s33
      %s50 = sphi 0, %s34
      %s54 = sphi 0, %s54
      %s56 = sphi 0, %s54
      %s57 = sphi 0, %s56
      %s71 = sphi 0, %s57
      %s77 = sphi 0, %s79
      %s80 = sphi 0, %s77
      %s81 = sphi 0, %s80
      %s97 = sphi 0, %s81
      %s103 = sphi 0, %s105
      %s106 = sphi 0, %s103
      %s107 = sphi 0, %s106
      %s123 = sphi 0, %s107
    $region4: #{tpu_custom_call.1} parent=1 // loop_header_branch
      %23 = sbr.rel (%p21) target = $region8
    $region5: #{tpu_custom_call.1} parent=1 // loop_body
      %s25 = ssub.s32 %s20, 1
      %s26 = ssub.s32 %s20, 2
      %s27 = sadd.s32 %s20, 1
      %s28 = ssub.s32 %s20, %s27
      %p29 = scmp.eq.s32.totalorder %s28, 0
      %s31 = sadd.s32 %s30, 1
      %s32 = scalar_select %p29, %s30, %s31
      %p35 = pneg %p29
      %p36 = scmp.eq.s32.totalorder %s20, 1
      %p37 = por %p35, %p36
      %p38 = scmp.ne.s32.totalorder %s30, %s33
      %p39 = scmp.eq.s32.totalorder %s20, 0
      %p40 = por %p38, %p39
      %p41 = scmp.ne.s32.totalorder %s30, %s33
      %p42 = scmp.eq.s32.totalorder %s25, 1
      %p43 = por %p41, %p42
      %p44 = scmp.ne.s32.totalorder %s33, %s34
      %p45 = scmp.eq.s32.totalorder %s25, 0
      %p46 = por %p44, %p45
      %p47 = scmp.ne.s32.totalorder %s33, %s34
      %p48 = scmp.eq.s32.totalorder %s26, 1
      %p49 = por %p47, %p48
      %p51 = scmp.ne.s32.totalorder %s34, %s50
      %p52 = scmp.eq.s32.totalorder %s26, 0
      %p53 = por %p51, %p52
      %s55 = sadd.s32 %s54, 1
      %p58 = scmp.eq.s32.totalorder %s20, 1
      %p59 = scmp.ne.s32.totalorder %s54, %s56
      %p60 = scmp.eq.s32.totalorder %s20, 0
      %p61 = por %p59, %p60
      %p62 = scmp.ne.s32.totalorder %s54, %s56
      %p63 = scmp.eq.s32.totalorder %s25, 1
      %p64 = por %p62, %p63
      %p65 = scmp.ne.s32.totalorder %s56, %s57
      %p66 = scmp.eq.s32.totalorder %s25, 0
      %p67 = por %p65, %p66
      %p68 = scmp.ne.s32.totalorder %s56, %s57
      %p69 = scmp.eq.s32.totalorder %s26, 1
      %p70 = por %p68, %p69
      %p72 = scmp.ne.s32.totalorder %s57, %s71
      %p73 = scmp.eq.s32.totalorder %s26, 0
      %p74 = por %p72, %p73
      %s75 = ssub.s32 %s20, %s27
      %p76 = scmp.eq.s32.totalorder %s75, 0
      %s78 = sadd.s32 %s77, 1
      %s79 = scalar_select %p76, %s77, %s78
      %p82 = pneg %p76
      %p83 = scmp.eq.s32.totalorder %s20, 1
      %p84 = por %p82, %p83
      %p85 = scmp.ne.s32.totalorder %s77, %s80
      %p86 = scmp.eq.s32.totalorder %s20, 0
      %p87 = por %p85, %p86
      %p88 = scmp.ne.s32.totalorder %s77, %s80
      %p89 = scmp.eq.s32.totalorder %s25, 1
      %p90 = por %p88, %p89
      %p91 = scmp.ne.s32.totalorder %s80, %s81
      %p92 = scmp.eq.s32.totalorder %s25, 0
      %p93 = por %p91, %p92
      %p94 = scmp.ne.s32.totalorder %s80, %s81
      %p95 = scmp.eq.s32.totalorder %s26, 1
      %p96 = por %p94, %p95
      %p98 = scmp.ne.s32.totalorder %s81, %s97
      %p99 = scmp.eq.s32.totalorder %s26, 0
      %p100 = por %p98, %p99
      %s101 = ssub.s32 %s20, %s27
      %p102 = scmp.eq.s32.totalorder %s101, 0
      %s104 = sadd.s32 %s103, 1
      %s105 = scalar_select %p102, %s103, %s104
      %p108 = pneg %p102
      %p109 = scmp.eq.s32.totalorder %s20, 1
      %p110 = por %p108, %p109
      %p111 = scmp.ne.s32.totalorder %s103, %s106
      %p112 = scmp.eq.s32.totalorder %s20, 0
      %p113 = por %p111, %p112
      %p114 = scmp.ne.s32.totalorder %s103, %s106
      %p115 = scmp.eq.s32.totalorder %s25, 1
      %p116 = por %p114, %p115
      %p117 = scmp.ne.s32.totalorder %s106, %s107
      %p118 = scmp.eq.s32.totalorder %s25, 0
      %p119 = por %p117, %p118
      %p120 = scmp.ne.s32.totalorder %s106, %s107
      %p121 = scmp.eq.s32.totalorder %s26, 1
      %p122 = por %p120, %p121
      %p124 = scmp.ne.s32.totalorder %s107, %s123
      %p125 = scmp.eq.s32.totalorder %s26, 0
      %p126 = por %p124, %p125
      %p127 = scmp.le.s32.totalorder 1, %s20
      %p128 = scmp.lt.s32.totalorder %s20, 3
      %p129 = pnand %p127, %p128
      %p130 = pneg %p129
      // Predicated region
      $region9: #{tpu_custom_call.1} parent=5 // pred_check
        _
      $region10: #{tpu_custom_call.1} parent=5 // pred_check_branch
        %132 = sbr.rel (%p129) target = $region12
      $region11: #{tpu_custom_call.1} parent=5 // pred_region
        %s133 = ssub.s32 %s20, 1
        // Predicated region
        $region13: #{tpu_custom_call.1} parent=11 // pred_check
          %p134 = pneg %p67
        $region14: #{tpu_custom_call.1} parent=11 // pred_check_branch
          %136 = sbr.rel (%p134) target = $region16
        $region15: #{tpu_custom_call.1} parent=11 // pred_region
          %s138 = ssub.s32 64, 64
          %139 = vsyncadd [#allocation6], %s138
          %s141 = sshll.u32 [#allocation5], 4
          %s142 = int_to_ptr.vmem [resolvable:$true] %s141
          %144 = dma.hbm_to_vmem [thread:$0]  %s1, 64, %s142, [#allocation6]
        $region16: #{tpu_custom_call.1} parent=11 // pred_fallthru
          _
      $region12: #{tpu_custom_call.1} parent=5 // pred_fallthru
        _
      %p145 = scmp.lt.s32.totalorder %s20, 2
      // Predicated region
      $region17: #{tpu_custom_call.1} parent=5 // pred_check
        %p146 = pneg %p145
      $region18: #{tpu_custom_call.1} parent=5 // pred_check_branch
        %148 = sbr.rel (%p146) target = $region20
      $region19: #{tpu_custom_call.1} parent=5 // pred_region
        // Predicated region
        $region21: #{tpu_custom_call.1} parent=19 // pred_check
          %p149 = pneg %p40
        $region22: #{tpu_custom_call.1} parent=19 // pred_check_branch
          %151 = sbr.rel (%p149) target = $region24
        $region23: #{tpu_custom_call.1} parent=19 // pred_region
          %s152 = sand.u32 %s30, 1
          %s153 = scalar_lea.sflag [#allocation3], %s152
          %s154 = sand.u32 %s30, 1
          %s155 = smul.addr %s154, 40
          %s156 = scalar_lea.vmem [#allocation2], %s155
          %s157 = smul.u32 2, %s20
          %s159 = ssub.s32 640, 640
          %160 = vsyncadd %s153, %s159
          %s161 = smul.addr %s157, 64
          %s162 = scalar_lea.hbm %s0, %s161
          %s163 = sshll.u32 %s156, 4
          %s164 = int_to_ptr.vmem [resolvable:$true] %s163
          %169 = dma.hbm_to_vmem [thread:$0]  %s162, 640, %s164, %s153, 256, 128, 8
        $region24: #{tpu_custom_call.1} parent=19 // pred_fallthru
          _
      $region20: #{tpu_custom_call.1} parent=5 // pred_fallthru
        _
      %p170 = scmp.le.s32.totalorder 1, %s20
      %p171 = scmp.lt.s32.totalorder %s20, 3
      %p172 = pnand %p170, %p171
      %p173 = pneg %p172
      // Predicated region
      $region25: #{tpu_custom_call.1} parent=5 // pred_check
        _
      $region26: #{tpu_custom_call.1} parent=5 // pred_check_branch
        %175 = sbr.rel (%p172) target = $region28
      $region27: #{tpu_custom_call.1} parent=5 // pred_region
        %s176 = ssub.s32 %s20, 1
        %s177 = sand.u32 %s33, 1
        %s178 = scalar_lea.sflag [#allocation3], %s177
        %s179 = sand.u32 %s33, 1
        %s180 = smul.addr %s179, 40
        %s181 = scalar_lea.vmem [#allocation2], %s180
        // Predicated region
        $region29: #{tpu_custom_call.1} parent=27 // pred_check
          %p182 = pneg %p46
        $region30: #{tpu_custom_call.1} parent=27 // pred_check_branch
          %184 = sbr.rel (%p182) target = $region32
        $region31: #{tpu_custom_call.1} parent=27 // pred_region
          %185 = dma.done %s178, 640
        $region32: #{tpu_custom_call.1} parent=27 // pred_fallthru
          _
        // Predicated region
        $region33: #{tpu_custom_call.1} parent=27 // pred_check
          %p186 = pneg %p67
        $region34: #{tpu_custom_call.1} parent=27 // pred_check_branch
          %188 = sbr.rel (%p186) target = $region36
        $region35: #{tpu_custom_call.1} parent=27 // pred_region
          %189 = dma.done [#allocation6], 64
        $region36: #{tpu_custom_call.1} parent=27 // pred_fallthru
          _
        %s190 = sand.u32 %s33, 1
        %s191 = scalar_lea.sflag [#allocation3], %s190
        %s192 = sand.u32 %s33, 1
        %s193 = smul.addr %s192, 40
        %s194 = scalar_lea.vmem [#allocation2], %s193
        %p195 = pneg %p46
        %p196 = pneg %p43
        %p197 = pneg %p67
        %p198 = pneg %p64
        %p199 = pneg %p93
        %p200 = pneg %p90
        %s201 = sand.u32 %s80, 1
        %s202 = scalar_lea.sflag [#allocation4], %s201
        %s203 = sand.u32 %s80, 1
        %s204 = smul.addr %s203, 16
        %s205 = scalar_lea.vmem [#allocation7], %s204
        %p206 = pneg %p119
        %p207 = pneg %p116
        %s208 = sand.u32 %s106, 1
        %s209 = scalar_lea.sflag [#allocation9], %s208
        %s210 = sand.u32 %s106, 1
        %s211 = smul.addr %s210, 8
        %s212 = scalar_lea.vmem [#allocation8], %s211
        %s213 = smul.u32 2, %s25
        %s214 = smul.u32 2, %s25
        %v216 = vld [vmem:[#allocation5] sm:$0xf]
        %v217 = vld [vmem:[%s181] sm:$0xff]
        %v218 = vld [vmem:[%s181 + $0x8] sm:$0xff]
        %v219 = vld [vmem:[%s181 + $0x10] sm:$0xff]
        %v220 = vld [vmem:[%s181 + $0x18] sm:$0xff]
        %v221 = vld [vmem:[%s181 + $0x20] sm:$0x33]
        %v227 = vunpack.c.l.b16 %v217
        %v228 = vunpack.c.h.b16 %v217
        %v229 = vunpack.c.l.b16 %v218
        %v230 = vunpack.c.h.b16 %v218
        %v231 = vunpack.c.l.b16 %v219
        %v232 = vunpack.c.h.b16 %v219
        %v233 = vunpack.c.l.b16 %v220
        %v234 = vunpack.c.h.b16 %v220
        %v235 = vunpack.c.l.b16 %v221
        %v236 = vunpack.c.h.b16 %v221
        %v237 = vpack.c.b16 %v229, %v227
        %v238 = vpack.c.b16 %v230, %v228
        %v239 = vpack.c.b16 %v233, %v231
        %v240 = vpack.c.b16 %v234, %v232
        %v241 = vpack.c.b16 %v235, %v235
        %v242 = vpack.c.b16 %v236, %v236
        %vm247 = vcmask 293888
        %v249 = vsel %vm247, %v216, 0
        %vm251 = vcmask 1041408
        %v253 = vsel %vm251, %v241, 0
        %v256 = vsel %vm251, %v242, 0
        %258 = vmatprep.subr.bf16.mxu0 0
        %259 = vmatpush1.bf16.msra.mxu0 0
        %260 = vmatprep.subr.bf16.mxu0 0
        %261 = vmatpush1.bf16.msra.mxu0 0
        %262 = vmatprep.subr.bf16.mxu0 0
        %263 = vmatpush1.bf16.msra.mxu0 0
        %264 = vmatprep.subr.bf16.mxu0 0
        %265 = vmatpush1.bf16.msra.mxu0 0
        %266 = vmatprep.subr.bf16.mxu0 0
        %267 = vmatpush1.bf16.msra.mxu0 0
        %268 = vmatprep.subr.bf16.mxu0 %v256
        %269 = vmatpush1.bf16.msra.mxu0 %v253
        %270 = vmatprep.subr.bf16.mxu0 %v240
        %271 = vmatpush1.bf16.msra.mxu0 %v239
        %272 = vmatprep.subr.bf16.mxu0 %v238
        %273 = vmatpush1.bf16.msra.mxu0 %v237
        %274 = vmatprep.subr.bf16.mxu0 0
        %275 = vmatpush2.bf16.msra.mxu0 0
        %276 = vmatprep.subr.bf16.mxu0 0
        %277 = vmatpush2.bf16.msra.mxu0 0
        %278 = vmatprep.subr.bf16.mxu0 0
        %279 = vmatpush2.bf16.msra.mxu0 0
        %280 = vmatprep.subr.bf16.mxu0 0
        %281 = vmatpush2.bf16.msra.mxu0 0
        %282 = vmatprep.subr.bf16.mxu0 0
        %283 = vmatpush2.bf16.msra.mxu0 0
        %284 = vmatprep.subr.bf16.mxu0 0
        %285 = vmatpush2.bf16.msra.mxu0 0
        %286 = vmatprep.subr.bf16.mxu0 0
        %287 = vmatpush2.bf16.msra.mxu0 0
        %288 = vmatprep.subr.bf16.mxu0 0
        %289 = vmatpush2.bf16.msra.mxu0 0
        %290 = vmatprep.mubr.bf16.mxu0 0
        %291 = vmatmul.mubr.bf16.gmra.mxu0 %v249
        %v292 = vpop.f32.mrf.mxu0
        %v293 = vadd.f32 0.0, %v292
        %v294 = vpop.f32.mrf.mxu0
        %v295 = vadd.f32 0.0, %v294
        %v296 = vpop.f32.mrf.mxu0
        %v297 = vpop.f32.mrf.mxu0
        %298 = vdwg.mxu0
        %299 = vst [vmem:[%s205] sm:$0xff] %v293
        %300 = vst [vmem:[%s205 + $0x8] sm:$0xff] %v295
        %301 = vst [vmem:[%s212] sm:$0xff] 0.0
        %v302 = vadd.f32 %v293, %v295
        %303 = vadd.xlane.f32.xlu0 %v302
        %v304 = vpop.xlane.xlu0 %303
        %vm305 = vcmask 7168
        %306 = vst.msk [vmem:[%s212] sm:$0xff] %vm305, %v304
        %v307 = vmul.f32 %v293, %v293
        %v308 = vmul.f32 %v295, %v295
        %v309 = vadd.f32 %v307, %v308
        %310 = vadd.xlane.f32.xlu0 %v309
        %v311 = vpop.xlane.xlu0 %310
        %vm312 = vcmask 15368
        %313 = vst.msk [vmem:[%s212] sm:$0xff] %vm312, %v311
        %s314 = sand.u32 %s80, 1
        %s315 = scalar_lea.sflag [#allocation4], %s314
        %s316 = sand.u32 %s80, 1
        %s317 = smul.addr %s316, 16
        %s318 = scalar_lea.vmem [#allocation7], %s317
        %s319 = sand.u32 %s106, 1
        %s320 = scalar_lea.sflag [#allocation9], %s319
        %s321 = sand.u32 %s106, 1
        %s322 = smul.addr %s321, 8
        %s323 = scalar_lea.vmem [#allocation8], %s322
        // Predicated region
        $region37: #{tpu_custom_call.1} parent=27 // pred_check
          %p324 = pneg %p90
        $region38: #{tpu_custom_call.1} parent=27 // pred_check_branch
          %326 = sbr.rel (%p324) target = $region40
        $region39: #{tpu_custom_call.1} parent=27 // pred_region
          %s327 = smul.u32 2, %s25
          %s329 = ssub.s32 256, 256
          %330 = vsyncadd %s315, %s329
          %s331 = smul.addr %s327, 128
          %s332 = scalar_lea.hbm %s2, %s331
          %s334 = sshll.u32 %s318, 4
          %s335 = int_to_ptr.vmem [resolvable:$true] %s334
          %337 = dma.vmem_to_hbm [thread:$0]  %s335, 256, %s332, %s315
        $region40: #{tpu_custom_call.1} parent=27 // pred_fallthru
          _
        // Predicated region
        $region41: #{tpu_custom_call.1} parent=27 // pred_check
          %p338 = pneg %p116
        $region42: #{tpu_custom_call.1} parent=27 // pred_check_branch
          %340 = sbr.rel (%p338) target = $region44
        $region43: #{tpu_custom_call.1} parent=27 // pred_region
          %s342 = ssub.s32 128, 128
          %343 = vsyncadd %s320, %s342
          %s344 = smul.addr %s25, 128
          %s345 = scalar_lea.hbm %s3, %s344
          %s347 = sshll.u32 %s323, 4
          %s348 = int_to_ptr.vmem [resolvable:$true] %s347
          %350 = dma.vmem_to_hbm [thread:$0]  %s348, 128, %s345, %s320
        $region44: #{tpu_custom_call.1} parent=27 // pred_fallthru
          _
      $region28: #{tpu_custom_call.1} parent=5 // pred_fallthru
        _
      %p351 = scmp.le.s32.totalorder 2, %s20
      // Predicated region
      $region45: #{tpu_custom_call.1} parent=5 // pred_check
        %p352 = pneg %p351
      $region46: #{tpu_custom_call.1} parent=5 // pred_check_branch
        %354 = sbr.rel (%p352) target = $region48
      $region47: #{tpu_custom_call.1} parent=5 // pred_region
        %s355 = ssub.s32 %s20, 2
        // Predicated region
        $region49: #{tpu_custom_call.1} parent=47 // pred_check
          %p356 = pneg %p96
        $region50: #{tpu_custom_call.1} parent=47 // pred_check_branch
          %358 = sbr.rel (%p356) target = $region52
        $region51: #{tpu_custom_call.1} parent=47 // pred_region
          %s359 = sand.u32 %s81, 1
          %s360 = scalar_lea.sflag [#allocation4], %s359
          %s361 = sand.u32 %s81, 1
          %s362 = smul.addr %s361, 16
          %s363 = scalar_lea.vmem [#allocation7], %s362
          %364 = dma.done %s360, 256
        $region52: #{tpu_custom_call.1} parent=47 // pred_fallthru
          _
        // Predicated region
        $region53: #{tpu_custom_call.1} parent=47 // pred_check
          %p365 = pneg %p122
        $region54: #{tpu_custom_call.1} parent=47 // pred_check_branch
          %367 = sbr.rel (%p365) target = $region56
        $region55: #{tpu_custom_call.1} parent=47 // pred_region
          %s368 = sand.u32 %s107, 1
          %s369 = scalar_lea.sflag [#allocation9], %s368
          %s370 = sand.u32 %s107, 1
          %s371 = smul.addr %s370, 8
          %s372 = scalar_lea.vmem [#allocation8], %s371
          %373 = dma.done %s369, 128
        $region56: #{tpu_custom_call.1} parent=47 // pred_fallthru
          _
      $region48: #{tpu_custom_call.1} parent=5 // pred_fallthru
        _
    $region6: #{tpu_custom_call.1} parent=1 // loop_footer
      %s24 = sadd.s32 1, %s20
    $region7: #{tpu_custom_call.1} parent=1 // loop_footer_branch
      %19 = sbr.rel target = $region3
    $region8: #{tpu_custom_call.1} parent=1 // loop_exit
      _
    %374 = vsyncpa [#allocation3], 1
    %s375 = scalar_lea.sflag [#allocation3], 1
    %376 = vsyncpa %s375, 1
    %377 = vsyncpa [#allocation6], 1
    %378 = vsyncpa [#allocation4], 1
    %s379 = scalar_lea.sflag [#allocation4], 1
    %380 = vsyncpa %s379, 1
    %381 = vsyncpa [#allocation9], 1
    %s382 = scalar_lea.sflag [#allocation9], 1
    %383 = vsyncpa %s382, 1

</llo_original>
